<compile_context>
chip_gen: v7x
topology: tpu7x:2x2x1
jax: 0.10.0
libtpu: 0.0.40
codegen_flags: <defaults>
</compile_context>

<pallas_src>
import functools

import jax
import jax.numpy as jnp
from jax.experimental import pallas as pl
from jax.experimental.pallas import tpu as pltpu


# ------------------------------------------------------------------
# Kernel 1: cross-entropy (mean reduction), tiled over the batch
# ------------------------------------------------------------------
def _ce_kernel(labels_ref, logits_ref, nll_ref, acc_ref, *, batch, tile_b):
    i = pl.program_id(0)

    @pl.when(i == 0)
    def _():
        acc_ref[...] = jnp.zeros_like(acc_ref)

    logits = logits_ref[...].astype(jnp.float32)                  # (tile_b, C)
    labels = labels_ref[...]                                      # (tile_b, 1) int32

    # numerically stable log-sum-exp per row
    m = jnp.max(logits, axis=-1, keepdims=True)                   # (tile_b, 1)
    lse = m + jnp.log(jnp.sum(jnp.exp(logits - m), axis=-1, keepdims=True))

    # gather the label logit via a one-hot select (no dynamic gather on TPU)
    col = jax.lax.broadcasted_iota(jnp.int32, logits.shape, 1)    # (tile_b, C)
    correct = jnp.sum(jnp.where(col == labels, logits, 0.0),
                      axis=-1, keepdims=True)                     # (tile_b, 1)

    nll_per_row = lse - correct                                   # (tile_b, 1)

    # mask rows past the end of the batch (ragged last tile); cheap: (tile_b,1)
    row = jax.lax.broadcasted_iota(jnp.int32, nll_per_row.shape, 0)
    valid = batch - i * tile_b
    nll_per_row = jnp.where(row < valid, nll_per_row, 0.0)

    acc_ref[...] += nll_per_row

    @pl.when(i == pl.num_programs(0) - 1)
    def _():
        nll_ref[...] = (jnp.sum(acc_ref[...]) / float(batch)).reshape(1, 1)


def cross_entropy_pallas(labels, logits, *, max_tile_b=1024,
                         block_budget_bytes=8 * 1024 * 1024):
    B, C = logits.shape
    labels2d = labels.reshape(B, 1).astype(jnp.int32)

    # Auto-size the batch tile so one (tb, C) logits block stays under the
    # budget (Pallas double-buffers it), but still moves >= ~1 MiB per step
    # when C is small.
    itemsize = jnp.dtype(logits.dtype).itemsize
    tb = max(8, min(max_tile_b,
                    (block_budget_bytes // max(1, C * itemsize)) // 8 * 8))
    if B <= tb:
        tb = B                        # single block == full batch dim
    grid = pl.cdiv(B, tb)
    # TODO(synk): for very large vocabularies (where even 8 rows x C exceeds
    # the budget) stream the class axis with an online log-sum-exp instead of
    # one whole-C block per step.

    kernel = functools.partial(_ce_kernel, batch=B, tile_b=tb)
    out = pl.pallas_call(
        kernel,
        out_shape=jax.ShapeDtypeStruct((1, 1), jnp.float32),
        grid_spec=pltpu.PrefetchScalarGridSpec(
            num_scalar_prefetch=0,
            grid=(grid,),
            in_specs=[
                pl.BlockSpec((tb, 1), lambda i: (i, 0)),
                pl.BlockSpec((tb, C), lambda i: (i, 0)),
            ],
            out_specs=pl.BlockSpec((1, 1), lambda i: (0, 0)),
            scratch_shapes=[pltpu.VMEM((tb, 1), jnp.float32)],
        ),
        compiler_params=pltpu.CompilerParams(
            dimension_semantics=("arbitrary",),          # batch axis is a reduction
            vmem_limit_bytes=48 * 1024 * 1024,
        ),
    )(labels2d, logits)
    # TODO(synk): on v7x a leading 2-way "parallel" batch split (like the L2
    # kernel below) would use the second TensorCore for CE as well.
    return out[0, 0]


# ------------------------------------------------------------------
# Kernel 2: sum(params**2), large-block streaming reduction
# ------------------------------------------------------------------
def _l2_kernel(p_ref, out_ref, acc_ref, *, total_rows, tile_rows,
               num_blocks, blocks_per_split):
    c = pl.program_id(0)                       # core-split axis ("parallel")
    k = pl.program_id(1)                       # streaming axis ("arbitrary")
    g = c * blocks_per_split + k               # logical global block index

    @pl.when(k == 0)
    def _():
        acc_ref[...] = jnp.zeros_like(acc_ref)

    # Fast path: interior blocks, no masking -- a single FMA per element plus
    # vreg-wise adds into the fixed (8, 128) accumulator.
    @pl.when(g < num_blocks - 1)
    def _():
        x = p_ref[...].astype(jnp.float32)                     # (tile_rows, 128)
        acc_ref[...] += jnp.sum(
            (x * x).reshape(tile_rows // 8, 8, 128), axis=0)

    # Slow path: the ragged last block and any clamped OOB duplicate block
    # (the duplicate contributes exactly zero because valid <= 0).
    @pl.when(g >= num_blocks - 1)
    def _():
        x = p_ref[...].astype(jnp.float32)
        row = jax.lax.broadcasted_iota(jnp.int32, x.shape, 0)
        valid = total_rows - g * tile_rows
        x = jnp.where(row < valid, x, 0.0)
        acc_ref[...] += jnp.sum(
            (x * x).reshape(tile_rows // 8, 8, 128), axis=0)

    @pl.when(k == pl.num_programs(1) - 1)
    def _():
        out_ref[...] = jnp.sum(acc_ref[...]).reshape(1, 1)


def _l2_sum_squares_pallas(params_flat, *, tile_rows=8192, lanes=128):
    p = params_flat                           # keep native dtype (bf16 stays bf16)
    n = p.shape[0]
    rows = n // lanes
    rem = n - rows * lanes

    if rows < 8:
        # Too small to be worth a kernel launch.
        return jnp.sum(p.astype(jnp.float32) ** 2)

    tail_sq = jnp.float32(0.0)
    if rem:
        # TODO(synk): the 128-aligned prefix slice still copies the vector once
        # in HBM; a fully copy-free ragged path needs a manual 1-D DMA from an
        # ANY-space ref.
        tail_sq = jnp.sum(p[rows * lanes:].astype(jnp.float32) ** 2)
        head = p[: rows * lanes]
    else:
        head = p
    p2 = head.reshape(rows, lanes)            # lane-dense (rows, 128) view

    # Block row count: multiple of 8, capped by the available rows.
    tr = min(tile_rows, (rows // 8) * 8)
    num_blocks = pl.cdiv(rows, tr)
    # Leading "parallel" axis -> second TensorCore on v7x; no-op on v5e/v6e.
    split = 2 if num_blocks >= 2 else 1
    bpc = pl.cdiv(num_blocks, split)

    kernel = functools.partial(_l2_kernel, total_rows=rows, tile_rows=tr,
                               num_blocks=num_blocks, blocks_per_split=bpc)
    partials = pl.pallas_call(
        kernel,
        out_shape=jax.ShapeDtypeStruct((split, 1), jnp.float32),
        grid_spec=pltpu.PrefetchScalarGridSpec(
            num_scalar_prefetch=0,
            grid=(split, bpc),
            in_specs=[
                # Clamp the block index so the (possible) extra step of the
                # second split re-reads the last block; it is fully masked.
                pl.BlockSpec(
                    (tr, lanes),
                    lambda c, k: (jnp.minimum(c * bpc + k, num_blocks - 1), 0)),
            ],
            out_specs=pl.BlockSpec((1, 1), lambda c, k: (c, 0)),
            scratch_shapes=[pltpu.VMEM((8, lanes), jnp.float32)],
        ),
        compiler_params=pltpu.CompilerParams(
            dimension_semantics=("parallel", "arbitrary"),
            vmem_limit_bytes=48 * 1024 * 1024,   # < v7x's 64 MiB physical
        ),
    )(p2)
    return jnp.sum(partials) + tail_sq


def l2_log_prob_pallas(params_flat, alpha, *, tile_rows=8192):
    ss = _l2_sum_squares_pallas(params_flat, tile_rows=tile_rows)
    return (0.5 * jnp.float32(alpha)) * ss


# ------------------------------------------------------------------
# Module-equivalent wrapper (N is accepted but unused, matching the spec)
# ------------------------------------------------------------------
def l2_zero_loss(labels, logits, params_flat, alpha, N=1):
    # TODO(synk): CE and L2 run as two serialized pallas_calls; fusing them into
    # one kernel would let the HBM-bound L2 stream hide behind the CE math.
    nll = cross_entropy_pallas(labels, logits)
    log_prob = l2_log_prob_pallas(params_flat, alpha)
    return {"nll": nll, "log_prob": log_prob, "loss": nll + log_prob}


if __name__ == "__main__":
    key = jax.random.PRNGKey(0)
    k1, k2, k3 = jax.random.split(key, 3)

    B, C = 8, 32                      # batch, num classes
    P = 600 * 128 + 37                # ragged flat parameter count (exercises
                                      # lane tail + ragged row mask)

    logits = jax.random.normal(k1, (B, C), dtype=jnp.float32)
    labels = jax.random.randint(k2, (B,), 0, C, dtype=jnp.int32)
    params = jax.random.normal(k3, (P,), dtype=jnp.float32) * 0.1
    alpha = 0.01

    # Default (large-block) path.
    out = l2_zero_loss(labels, logits, params, alpha)
    out = jax.block_until_ready(out)

    # Small-block path: exercises the multi-block grid, the 2-way core split,
    # the clamped duplicate block and the ragged-row masked tail block.
    lp_small = l2_log_prob_pallas(params, alpha, tile_rows=128)
    lp_small = jax.block_until_ready(lp_small)

    # Pure-JAX reference check.
    logp = jax.nn.log_softmax(logits, axis=-1)
    ref_nll = -jnp.mean(logp[jnp.arange(B), labels])
    ref_lp = alpha / 2 * jnp.sum(params ** 2)
    assert jnp.allclose(out["nll"], ref_nll, rtol=1e-5, atol=1e-5)
    assert jnp.allclose(out["log_prob"], ref_lp, rtol=1e-5, atol=1e-5)
    assert jnp.allclose(out["loss"], ref_nll + ref_lp, rtol=1e-5, atol=1e-5)
    assert jnp.allclose(lp_small, ref_lp, rtol=1e-5, atol=1e-5)

    print("KERNEL_OK")
</pallas_src>

<mosaic_0001>
module attributes {stable_mosaic.version = 11 : i64} {
  func.func @_ce_kernel(%arg0: i32, %arg1: memref<8x1xi32, #tpu.memory_space<vmem>>, %arg2: memref<8x32xf32, #tpu.memory_space<vmem>>, %arg3: memref<1x1xf32, #tpu.memory_space<vmem>>, %arg4: memref<8x1xf32, #tpu.memory_space<vmem>>) attributes {dimension_semantics = [#tpu.dimension_semantics<arbitrary>], iteration_bounds = array<i64: 1>, scalar_prefetch = 0 : i64, scratch_operands = 1 : i64, tpu.core_type = #tpu.core_type<tc>, window_params = [{transform_indices = @transform_0, window_bounds = array<i64: 8, 1>}, {transform_indices = @transform_1, window_bounds = array<i64: 8, 32>}, {pipeline_mode = #tpu.pipeline_mode<synchronous>, transform_indices = @transform_2, window_bounds = array<i64: 1, 1>}]} {
    %c0_i32 = arith.constant 0 : i32
    %0 = arith.cmpi eq, %arg0, %c0_i32 : i32
    %1 = arith.extui %0 : i1 to i32
    %c0_i32_0 = arith.constant 0 : i32
    %2 = arith.cmpi ne, %1, %c0_i32_0 : i32
    scf.if %2 {
      %cst_15 = arith.constant 0.000000e+00 : f32
      %35 = vector.broadcast %cst_15 : f32 to vector<8x1xf32>
      %c0_16 = arith.constant 0 : index
      %c0_17 = arith.constant 0 : index
      %36 = vector.load %arg4[%c0_16, %c0_17] : memref<8x1xf32, #tpu.memory_space<vmem>>, vector<8x1xf32>
      tpu.vector_store %arg4[%c0_16, %c0_17], %35 {strides = array<i32>} : memref<8x1xf32, #tpu.memory_space<vmem>>, vector<8x1xf32>,
    } else {
    }
    %c0 = arith.constant 0 : index
    %c0_1 = arith.constant 0 : index
    %3 = vector.load %arg2[%c0, %c0_1] : memref<8x32xf32, #tpu.memory_space<vmem>>, vector<8x32xf32>
    %c0_2 = arith.constant 0 : index
    %c0_3 = arith.constant 0 : index
    %4 = vector.load %arg1[%c0_2, %c0_3] : memref<8x1xi32, #tpu.memory_space<vmem>>, vector<8x1xi32>
    %cst = arith.constant dense<0xFF800000> : vector<8xf32>
    %5 = vector.multi_reduction <maximumf>, %3, %cst [1] : vector<8x32xf32> to vector<8xf32>
    %6 = vector.shape_cast %5 : vector<8xf32> to vector<8x1xf32>
    %7 = vector.broadcast %6 : vector<8x1xf32> to vector<8x32xf32>
    %8 = arith.subf %3, %7 : vector<8x32xf32>
    %9 = math.exp %8 : vector<8x32xf32>
    %cst_4 = arith.constant dense<0.000000e+00> : vector<8xf32>
    %10 = vector.multi_reduction <add>, %9, %cst_4 [1] : vector<8x32xf32> to vector<8xf32>
    %11 = vector.shape_cast %10 : vector<8xf32> to vector<8x1xf32>
    %12 = math.log %11 : vector<8x1xf32>
    %13 = arith.addf %6, %12 : vector<8x1xf32>
    %14 = tpu.iota {dimensions = array<i32: 1>} : vector<8x32xi32>
    %15 = vector.broadcast %4 : vector<8x1xi32> to vector<8x32xi32>
    %16 = arith.cmpi eq, %14, %15 : vector<8x32xi32>
    %cst_5 = arith.constant 0.000000e+00 : f32
    %17 = vector.broadcast %cst_5 : f32 to vector<8x32xf32>
    %18 = arith.select %16, %3, %17 : vector<8x32xi1>, vector<8x32xf32>
    %cst_6 = arith.constant dense<0.000000e+00> : vector<8xf32>
    %19 = vector.multi_reduction <add>, %18, %cst_6 [1] : vector<8x32xf32> to vector<8xf32>
    %20 = vector.shape_cast %19 : vector<8xf32> to vector<8x1xf32>
    %21 = arith.subf %13, %20 : vector<8x1xf32>
    %22 = tpu.iota {dimensions = array<i32: 0>} : vector<8x1xi32>
    %c8_i32 = arith.constant 8 : i32
    %23 = arith.muli %arg0, %c8_i32 : i32
    %c8_i32_7 = arith.constant 8 : i32
    %24 = arith.subi %c8_i32_7, %23 : i32
    %25 = vector.broadcast %24 : i32 to vector<8x1xi32>
    %26 = arith.cmpi slt, %22, %25 : vector<8x1xi32>
    %cst_8 = arith.constant 0.000000e+00 : f32
    %27 = vector.broadcast %cst_8 : f32 to vector<8x1xf32>
    %28 = arith.select %26, %21, %27 : vector<8x1xi1>, vector<8x1xf32>
    %c0_9 = arith.constant 0 : index
    %c0_10 = arith.constant 0 : index
    %29 = vector.load %arg4[%c0_9, %c0_10] : memref<8x1xf32, #tpu.memory_space<vmem>>, vector<8x1xf32>
    %30 = arith.addf %29, %28 : vector<8x1xf32>
    %c0_11 = arith.constant 0 : index
    %c0_12 = arith.constant 0 : index
    %31 = vector.load %arg4[%c0_11, %c0_12] : memref<8x1xf32, #tpu.memory_space<vmem>>, vector<8x1xf32>
    tpu.vector_store %arg4[%c0_11, %c0_12], %30 {strides = array<i32>} : memref<8x1xf32, #tpu.memory_space<vmem>>, vector<8x1xf32>,
    %c0_i32_13 = arith.constant 0 : i32
    %32 = arith.cmpi eq, %arg0, %c0_i32_13 : i32
    %33 = arith.extui %32 : i1 to i32
    %c0_i32_14 = arith.constant 0 : i32
    %34 = arith.cmpi ne, %33, %c0_i32_14 : i32
    scf.if %34 {
      %c0_15 = arith.constant 0 : index
      %c0_16 = arith.constant 0 : index
      %35 = vector.load %arg4[%c0_15, %c0_16] : memref<8x1xf32, #tpu.memory_space<vmem>>, vector<8x1xf32>
      %36 = vector.shape_cast %35 : vector<8x1xf32> to vector<1x8x1xf32>
      %cst_17 = arith.constant dense<0.000000e+00> : vector<1xf32>
      %37 = vector.multi_reduction <add>, %36, %cst_17 [1, 2] : vector<1x8x1xf32> to vector<1xf32>
      %38 = vector.shape_cast %37 : vector<1xf32> to vector<1x1x1xf32>
      %39 = vector.extract %38[0, 0, 0] : f32 from vector<1x1x1xf32>
      %cst_18 = arith.constant 8.000000e+00 : f32
      %40 = arith.divf %39, %cst_18 : f32
      %41 = vector.broadcast %40 : f32 to vector<1x1xf32>
      %c0_19 = arith.constant 0 : index
      %c0_20 = arith.constant 0 : index
      %42 = vector.load %arg3[%c0_19, %c0_20] : memref<1x1xf32, #tpu.memory_space<vmem>>, vector<1x1xf32>
      tpu.vector_store %arg3[%c0_19, %c0_20], %41 {strides = array<i32>} : memref<1x1xf32, #tpu.memory_space<vmem>>, vector<1x1xf32>,
    } else {
    }
    return
  }
  func.func @transform_0(%arg0: i32) -> (i32, i32) {
    %c0_i32 = arith.constant 0 : i32
    %c0_i32_0 = arith.constant 0 : i32
    return %arg0, %c0_i32 : i32, i32
  }
  func.func @transform_1(%arg0: i32) -> (i32, i32) {
    %c0_i32 = arith.constant 0 : i32
    %c0_i32_0 = arith.constant 0 : i32
    return %arg0, %c0_i32 : i32, i32
  }
  func.func @transform_2(%arg0: i32) -> (i32, i32) {
    %c0_i32 = arith.constant 0 : i32
    %c0_i32_0 = arith.constant 0 : i32
    %c0_i32_1 = arith.constant 0 : i32
    return %c0_i32, %c0_i32_0 : i32, i32
  }
}

</mosaic_0001>

<llo_original>
// kernel: tpu_custom_call.1
$region0: #{tpu_custom_call.1}
  #allocation0 [shape = 'u32[]', space=smem, size = 0x4, offset = 0x4, fixed_abs, tag = 'smem constant byte address 0x4 - core index']
  #allocation1 [shape = 'u32[144,128]{1,0:T(1,128)}', space=vmem, size = 0x12000, scoped, tag = 'internal scratch']
  #allocation2 [shape = 'f32[8,1]{1,0:T(8,128)}', space=vmem, size = 0x1000, scoped, tag = 'scratch operand']
  %s0 = inlined_call_operand.vmem [shape: s32[8,1], index: 0, kind: input, shape index: {}]
  %s1 = inlined_call_operand.vmem [shape: f32[8,32], index: 1, kind: input, shape index: {}]
  %s2 = inlined_call_operand.hbm [shape: f32[1,1], index: 2, kind: output, shape index: {}]
  %s3 = sld [smem:[#allocation0]]
  $region26: #{tpu_custom_call.1} parent=0
    _
  %s5 = ssub.s32 1, %s3
  %s6 = scalar_select 0, %s5, %s3
  $region1: #{tpu_custom_call.1} parent=0
    #allocation3 [shape = 'u8[512]{0}', space=vmem, size = 0x400, scoped, tag = 'output window, operand 0, single buffered']
    #allocation4 [shape = 's32[1]{0}', space=sflag, size = 0x4, scoped, tag = 'scoped memory for tpu_custom_call.1']
    %7 = vsyncpa [#allocation4], 0
    // Predicated region
    $region2: #{tpu_custom_call.1} parent=1 // pred_check
      _
    $region3: #{tpu_custom_call.1} parent=1 // pred_check_branch
      %9 = sbr.rel (0) target = $region5
    $region4: #{tpu_custom_call.1} parent=1 // pred_region
      _
    $region5: #{tpu_custom_call.1} parent=1 // pred_fallthru
      _
    // Predicated region
    $region6: #{tpu_custom_call.1} parent=1 // pred_check
      _
    $region7: #{tpu_custom_call.1} parent=1 // pred_check_branch
      %11 = sbr.rel (0) target = $region9
    $region8: #{tpu_custom_call.1} parent=1 // pred_region
      _
    $region9: #{tpu_custom_call.1} parent=1 // pred_fallthru
      _
    %p12 = scmp.eq.s32.totalorder 0, 0
    // Predicated region
    $region10: #{tpu_custom_call.1} parent=1 // pred_check
      %p13 = pneg %p12
    $region11: #{tpu_custom_call.1} parent=1 // pred_check_branch
      %15 = sbr.rel (%p13) target = $region13
    $region12: #{tpu_custom_call.1} parent=1 // pred_region
      %vm16 = vcmask 7168
      %17 = vst.msk [vmem:[#allocation2] sm:$0xff] %vm16, 0.0
    $region13: #{tpu_custom_call.1} parent=1 // pred_fallthru
      _
    %v18 = vld [vmem:[%s1] sm:$0xff]
    %v19 = vld [vmem:[%s0] sm:$0xff]
    %vm20 = vcmask 261120
    %v21 = vsel %vm20, %v18, -inf
    %22 = vmax.xlane.f32.xlu0 %v21
    %v23 = vpop.xlane.xlu0 %22
    %v24 = vsub.f32 %v18, %v23
    %v25 = vmul.f32 %v24, 1.442695
    %v26 = vpow.pop %v25
    %v27 = vsel %vm20, %v26, 0.0
    %28 = vadd.xlane.f32.xlu0 %v27
    %v29 = vpop.xlane.xlu0 %28
    %v30 = vlog2.pop %v29
    %v31 = vmul.f32 %v30, 0.6931472
    %v32 = vadd.f32 %v23, %v31
    %v33 = vlaneseq
    %v34 = vand.u32 %v33, 127
    %35 = vset.pattern.permute.xlu0 0
    %36 = vperm.xlu0 %35, %v19
    %v37 = vpop.permute.xlu0 %36
    %vm38 = vcmp.eq.s32.totalorder %v34, %v37
    %v39 = vsel %vm38, %v18, 0.0
    %v40 = vsel %vm20, %v39, 0.0
    %41 = vadd.xlane.f32.xlu0 %v40
    %v42 = vpop.xlane.xlu0 %41
    %v43 = vsub.f32 %v32, %v42
    %v44 = vlaneseq
    %v45 = vshrl.u32 %v44, 7
    %s46 = smul.u32 0, 8
    %s47 = ssub.s32 8, %s46
    %v48 = vstv %s47
    %vm49 = vcmp.lt.s32.totalorder %v45, %v48
    %v50 = vsel %vm49, %v43, 0.0
    %v51 = vld [vmem:[#allocation2] sm:$0xff]
    %v52 = vadd.f32 %v51, %v50
    %vm53 = vcmask 7168
    %54 = vst.msk [vmem:[#allocation2] sm:$0xff] %vm53, %v52
    // Predicated region
    $region14: #{tpu_custom_call.1} parent=1 // pred_check
      %p55 = pneg %p12
    $region15: #{tpu_custom_call.1} parent=1 // pred_check_branch
      %57 = sbr.rel (%p55) target = $region17
    $region16: #{tpu_custom_call.1} parent=1 // pred_region
      %v58 = vld [vmem:[#allocation2] sm:$0xff]
      %v59 = vsel %vm53, %v58, 0.0
      %60 = vadd.xlane.f32.xlu0 %v59
      %v61 = vpop.xlane.xlu0 %60
      %v62 = vrot.slane %v61, 4
      %v63 = vadd.f32 %v61, %v62
      %v64 = vrot.slane %v63, 2
      %v65 = vadd.f32 %v63, %v64
      %v66 = vrot.slane %v65, 1
      %v67 = vadd.f32 %v65, %v66
      %s68 = vtos %v67
      %v69 = vrcp.pop 8.0
      %s70 = vtos %v69
      %s71 = smul.f32 %s68, %s70
      %v72 = vstv %s71
      %vm73 = vcmask 0
      %74 = vst.msk [vmem:[#allocation3] sm:$0x1] %vm73, %v72
    $region17: #{tpu_custom_call.1} parent=1 // pred_fallthru
      _
    // Predicated region
    $region18: #{tpu_custom_call.1} parent=1 // pred_check
      _
    $region19: #{tpu_custom_call.1} parent=1 // pred_check_branch
      %76 = sbr.rel (0) target = $region21
    $region20: #{tpu_custom_call.1} parent=1 // pred_region
      %s78 = ssub.s32 16, 16
      %79 = vsyncadd [#allocation4], %s78
      %s81 = sshll.u32 [#allocation3], 4
      %s82 = int_to_ptr.vmem [resolvable:$true] %s81
      %84 = dma.vmem_to_hbm [thread:$0]  %s82, 16, %s2, [#allocation4]
    $region21: #{tpu_custom_call.1} parent=1 // pred_fallthru
      _
    // Predicated region
    $region22: #{tpu_custom_call.1} parent=1 // pred_check
      _
    $region23: #{tpu_custom_call.1} parent=1 // pred_check_branch
      %86 = sbr.rel (0) target = $region25
    $region24: #{tpu_custom_call.1} parent=1 // pred_region
      %87 = dma.done [#allocation4], 16
    $region25: #{tpu_custom_call.1} parent=1 // pred_fallthru
      _
    %88 = vsyncpa [#allocation4], 1

</llo_original>
